<compile_context>
chip_gen: v7x
topology: tpu7x:2x2x1
jax: 0.10.0
libtpu: 0.0.40
codegen_flags: <defaults>
</compile_context>

<pallas_src>
import functools

import jax
import jax.numpy as jnp
from jax import lax
from jax.experimental import pallas as pl
from jax.experimental.pallas import tpu as pltpu


def _vmem_capacity_bytes() -> int:
    try:
        return int(pltpu.get_tpu_info().vmem_capacity_bytes)
    except Exception:
        return 64 * 1024 * 1024  # conservative default (v7x per-TC VMEM)


def _sublane_tile(itemsize: int) -> int:
    # Packed sublane tile per element width: f32 -> 8, bf16 -> 16, int8/fp8 -> 32.
    return {4: 8, 2: 16, 1: 32}.get(itemsize, 8)


def _int_pow(x, p: int):
    """x**p for integer p >= 1 via square-and-multiply (VPU multiplies only)."""
    result = None
    base = x
    while p > 0:
        if p & 1:
            result = base if result is None else result * base
        p >>= 1
        if p:
            base = base * base
    return result


def _normalize_kernel(x_ref, o_ref, *, power: float):
    # Whole (tb, C) tile lives in VMEM; compute in f32 regardless of input dtype.
    x = x_ref[...].astype(jnp.float32)

    p_is_int = float(power) == int(power)
    p_int = int(power) if p_is_int else None

    if p_int == 1:
        s = jnp.sum(x, axis=-1, keepdims=True)
        inv = pl.reciprocal(s)
    elif p_int == 2:
        # sum(x*x) on VPU, single rsqrt per row on EUP, broadcast multiply.
        s = jnp.sum(x * x, axis=-1, keepdims=True)
        inv = lax.rsqrt(s)
    elif p_int == 4:
        x2 = x * x
        s = jnp.sum(x2 * x2, axis=-1, keepdims=True)
        inv = jnp.sqrt(lax.rsqrt(s))  # s ** (-1/4) without float pow
    elif p_int is not None and p_int >= 1:
        # Square-and-multiply for x**p (VPU), then one per-row pow(-1/p) on the
        # (tb, 1) column only.
        s = jnp.sum(_int_pow(x, p_int), axis=-1, keepdims=True)
        inv = s ** (-1.0 / float(power))
    else:
        # TODO(synk): non-integer power falls back to generic float pow (NaN for
        # negative x, matching torch's x.pow(p) semantics).
        s = jnp.sum(x ** power, axis=-1, keepdims=True)
        inv = s ** (-1.0 / float(power))

    o_ref[...] = (x * inv).astype(o_ref.dtype)


def _pick_tb(n: int, c: int, itemsize: int) -> int:
    sub = _sublane_tile(itemsize)
    row_bytes = c * itemsize
    vmem_cap = _vmem_capacity_bytes()

    # 128 MiB parts (v5e/v6e) can afford a larger fraction; 64 MiB v7x stays
    # conservative.  The in-kernel f32 upcast working set is budgeted below.
    frac = 0.55 if vmem_cap >= (96 << 20) else 0.40
    budget = int(vmem_cap * frac)

    # Live VMEM per row: 2x double-buffered input + 2x output blocks in the
    # input dtype, plus ~2 f32 working copies from the in-kernel upcast.
    per_row_live = 4 * row_bytes + 2 * c * 4
    tb_vmem = budget // max(per_row_live, 1)

    # Multi-MiB input blocks amortize the ~0.35 us/step pipeline overhead.
    tb_target = (4 << 20) // max(row_bytes, 1)

    tb = max(sub, min(tb_vmem, tb_target))
    tb = (tb // sub) * sub

    # Keep enough grid steps that both v7x TensorCores get >= 2 pipelined
    # blocks each, as long as blocks stay >= ~256 KiB of input.
    if pl.cdiv(n, tb) < 8:
        for steps in (8, 4):
            tb_s = (pl.cdiv(n, steps) // sub) * sub
            if tb_s >= sub and tb_s * row_bytes >= (256 << 10):
                tb = tb_s
                break

    # Never exceed the problem size (block == full array dim is always legal,
    # even when N is not a sublane multiple).
    tb = min(tb, n)
    return max(tb, 1)


def normalize(x: jax.Array, power: int = 2, *, tb: int | None = None) -> jax.Array:
    """Pallas equivalent of Normalize(power).forward(x) for 2-D x of shape (N, C)."""
    n, c = x.shape
    itemsize = jnp.dtype(x.dtype).itemsize

    if tb is None:
        tb = _pick_tb(n, c, itemsize)
    tb = max(1, min(tb, n))

    grid = pl.cdiv(n, tb)

    # Scoped VMEM limit sized to the double-buffered blocks plus the f32
    # working set, with headroom.
    vmem_cap = _vmem_capacity_bytes()
    needed = tb * c * (4 * itemsize) + 2 * tb * c * 4
    vmem_limit = max(32 << 20, min(int(needed * 1.3) + (4 << 20), int(vmem_cap * 0.9)))

    kernel = functools.partial(_normalize_kernel, power=float(power))
    out = pl.pallas_call(
        kernel,
        out_shape=jax.ShapeDtypeStruct((n, c), x.dtype),
        grid_spec=pltpu.PrefetchScalarGridSpec(
            num_scalar_prefetch=0,
            grid=(grid,),
            in_specs=[pl.BlockSpec((tb, c), lambda i: (i, 0))],
            out_specs=pl.BlockSpec((tb, c), lambda i: (i, 0)),
        ),
        compiler_params=pltpu.CompilerParams(
            dimension_semantics=("parallel",),
            vmem_limit_bytes=vmem_limit,
        ),
    )(x)
    return out


def _reference(x, power):
    norm = jnp.sum(x ** power, axis=1, keepdims=True) ** (1.0 / power)
    return x / norm


if __name__ == "__main__":
    key = jax.random.PRNGKey(0)
    k0, k1, k2, k3, k4 = jax.random.split(key, 5)

    # Small shape consistent with the module's 2-D input: batch=8, hidden=32.
    x = jax.random.normal(k0, (8, 32), dtype=jnp.float32)
    out = jax.block_until_ready(normalize(x, power=2))
    assert jnp.allclose(out, _reference(x, 2), atol=1e-5, rtol=1e-5)

    # N not a multiple of the sublane tile and C not a multiple of 128:
    # exercises the masked partial block / masked lane stores (no padding).
    x2 = jax.random.normal(k1, (12, 96), dtype=jnp.float32)
    out2 = jax.block_until_ready(normalize(x2, power=2))
    assert jnp.allclose(out2, _reference(x2, 2), atol=1e-5, rtol=1e-5)

    # Integer power != 2 (positive inputs so the p-th root is well defined).
    x3 = jnp.abs(jax.random.normal(k2, (16, 128), dtype=jnp.float32)) + 0.1
    out3 = jax.block_until_ready(normalize(x3, power=3))
    assert jnp.allclose(out3, _reference(x3, 3), atol=1e-4, rtol=1e-4)

    # power=1 path (per-row reciprocal finalize).
    x4 = jnp.abs(jax.random.normal(k3, (8, 32), dtype=jnp.float32)) + 0.1
    out4 = jax.block_until_ready(normalize(x4, power=1))
    assert jnp.allclose(out4, _reference(x4, 1), atol=1e-5, rtol=1e-5)

    # bf16 path (sublane tile 16, f32 upcast inside the kernel).
    x5 = jax.random.normal(k4, (32, 64), dtype=jnp.bfloat16)
    out5 = jax.block_until_ready(normalize(x5, power=2))
    ref5 = _reference(x5.astype(jnp.float32), 2)
    assert jnp.allclose(out5.astype(jnp.float32), ref5, atol=2e-2, rtol=2e-2)

    print("KERNEL_OK")
</pallas_src>

<mosaic_0001>
module attributes {stable_mosaic.version = 11 : i64} {
  func.func @_normalize_kernel(%arg0: i32, %arg1: memref<8x32xf32, #tpu.memory_space<vmem>>, %arg2: memref<8x32xf32, #tpu.memory_space<vmem>>) attributes {dimension_semantics = [#tpu.dimension_semantics<parallel>], iteration_bounds = array<i64: 1>, scalar_prefetch = 0 : i64, scratch_operands = 0 : i64, tpu.core_type = #tpu.core_type<tc>, window_params = [{transform_indices = @transform_0, window_bounds = array<i64: 8, 32>}, {transform_indices = @transform_1, window_bounds = array<i64: 8, 32>}]} {
    %c0 = arith.constant 0 : index
    %c0_0 = arith.constant 0 : index
    %0 = vector.load %arg1[%c0, %c0_0] : memref<8x32xf32, #tpu.memory_space<vmem>>, vector<8x32xf32>
    %1 = arith.mulf %0, %0 : vector<8x32xf32>
    %cst = arith.constant dense<0.000000e+00> : vector<8xf32>
    %2 = vector.multi_reduction <add>, %1, %cst [1] : vector<8x32xf32> to vector<8xf32>
    %3 = vector.shape_cast %2 : vector<8xf32> to vector<8x1xf32>
    %4 = math.rsqrt %3 : vector<8x1xf32>
    %5 = vector.broadcast %4 : vector<8x1xf32> to vector<8x32xf32>
    %6 = arith.mulf %0, %5 : vector<8x32xf32>
    %c0_1 = arith.constant 0 : index
    %c0_2 = arith.constant 0 : index
    %7 = vector.load %arg2[%c0_1, %c0_2] : memref<8x32xf32, #tpu.memory_space<vmem>>, vector<8x32xf32>
    tpu.vector_store %arg2[%c0_1, %c0_2], %6 {strides = array<i32>} : memref<8x32xf32, #tpu.memory_space<vmem>>, vector<8x32xf32>,
    return
  }
  func.func @transform_0(%arg0: i32) -> (i32, i32) {
    %c0_i32 = arith.constant 0 : i32
    %c0_i32_0 = arith.constant 0 : i32
    return %arg0, %c0_i32 : i32, i32
  }
  func.func @transform_1(%arg0: i32) -> (i32, i32) {
    %c0_i32 = arith.constant 0 : i32
    %c0_i32_0 = arith.constant 0 : i32
    return %arg0, %c0_i32 : i32, i32
  }
}

</mosaic_0001>

<llo_original>
// kernel: tpu_custom_call.1
$region0: #{tpu_custom_call.1}
  #allocation0 [shape = 'u32[]', space=smem, size = 0x4, offset = 0x4, fixed_abs, tag = 'smem constant byte address 0x4 - core index']
  #allocation1 [shape = 'u32[144,128]{1,0:T(1,128)}', space=vmem, size = 0x12000, scoped, tag = 'internal scratch']
  %s0 = inlined_call_operand.hbm [shape: f32[8,32], index: 0, kind: input, shape index: {}]
  %s1 = inlined_call_operand.hbm [shape: f32[8,32], index: 1, kind: output, shape index: {}]
  %s2 = sld [smem:[#allocation0]]
  $region18: #{tpu_custom_call.1} parent=0
    _
  %s4 = ssub.s32 1, %s2
  %s5 = scalar_select 0, %s4, %s2
  $region1: #{tpu_custom_call.1} parent=0
    #allocation2 [shape = 'u8[4096]{0}', space=vmem, size = 0x1000, scoped, tag = 'input window, operand 0, single buffered']
    #allocation3 [shape = 's32[1]{0}', space=sflag, size = 0x4, scoped, tag = 'scoped memory for tpu_custom_call.1']
    #allocation4 [shape = 's32[1]{0}', space=sflag, size = 0x4, scoped, tag = 'scoped memory for tpu_custom_call.1']
    #allocation5 [shape = 'u8[4096]{0}', space=vmem, size = 0x1000, scoped, tag = 'output window, operand 0, single buffered']
    %6 = vsyncpa [#allocation3], 0
    %7 = vsyncpa [#allocation4], 0
    // Predicated region
    $region2: #{tpu_custom_call.1} parent=1 // pred_check
      _
    $region3: #{tpu_custom_call.1} parent=1 // pred_check_branch
      %9 = sbr.rel (0) target = $region5
    $region4: #{tpu_custom_call.1} parent=1 // pred_region
      %s11 = ssub.s32 128, 128
      %12 = vsyncadd [#allocation3], %s11
      %s14 = sshll.u32 [#allocation2], 4
      %s15 = int_to_ptr.vmem [resolvable:$true] %s14
      %17 = dma.hbm_to_vmem [thread:$0]  %s0, 128, %s15, [#allocation3]
    $region5: #{tpu_custom_call.1} parent=1 // pred_fallthru
      _
    // Predicated region
    $region6: #{tpu_custom_call.1} parent=1 // pred_check
      _
    $region7: #{tpu_custom_call.1} parent=1 // pred_check_branch
      %19 = sbr.rel (0) target = $region9
    $region8: #{tpu_custom_call.1} parent=1 // pred_region
      %20 = dma.done [#allocation3], 128
    $region9: #{tpu_custom_call.1} parent=1 // pred_fallthru
      _
    %v21 = vld [vmem:[#allocation2] sm:$0xff]
    %v22 = vmul.f32 %v21, %v21
    %vm23 = vcmask 261120
    %v24 = vsel %vm23, %v22, 0.0
    %25 = vadd.xlane.f32.xlu0 %v24
    %v26 = vpop.xlane.xlu0 %25
    %v27 = vrsqrt.pop %v26
    %v28 = vmul.f32 %v21, %v27
    %29 = vst.msk [vmem:[#allocation5] sm:$0xff] %vm23, %v28
    // Predicated region
    $region10: #{tpu_custom_call.1} parent=1 // pred_check
      _
    $region11: #{tpu_custom_call.1} parent=1 // pred_check_branch
      %31 = sbr.rel (0) target = $region13
    $region12: #{tpu_custom_call.1} parent=1 // pred_region
      %s33 = ssub.s32 128, 128
      %34 = vsyncadd [#allocation4], %s33
      %s36 = sshll.u32 [#allocation5], 4
      %s37 = int_to_ptr.vmem [resolvable:$true] %s36
      %39 = dma.vmem_to_hbm [thread:$0]  %s37, 128, %s1, [#allocation4]
    $region13: #{tpu_custom_call.1} parent=1 // pred_fallthru
      _
    // Predicated region
    $region14: #{tpu_custom_call.1} parent=1 // pred_check
      _
    $region15: #{tpu_custom_call.1} parent=1 // pred_check_branch
      %41 = sbr.rel (0) target = $region17
    $region16: #{tpu_custom_call.1} parent=1 // pred_region
      %42 = dma.done [#allocation4], 128
    $region17: #{tpu_custom_call.1} parent=1 // pred_fallthru
      _
    %43 = vsyncpa [#allocation3], 1
    %44 = vsyncpa [#allocation4], 1

</llo_original>
